<compile_context>
chip_gen: v7x
topology: tpu7x:2x2x1
jax: 0.10.0
libtpu: 0.0.40
codegen_flags: <defaults>
</compile_context>

<pallas_src>
import math

import jax
import jax.numpy as jnp
from jax import lax
from jax.experimental import pallas as pl
from jax.experimental.pallas import tpu as pltpu


def _round_up(x, m):
    return (x + m - 1) // m * m


def _pick_tile(n, cap):
    """Largest multiple of 128 that divides n and is <= cap (requires n % 128 == 0)."""
    t = min(cap, n)
    t -= t % 128
    while n % t:
        t -= 128
    return t


# ----------------------------------------------------------------------------
# Tiled matmul kernel (QKV projection / output projection)
# ----------------------------------------------------------------------------
def _matmul_kernel(a_ref, b_ref, o_ref, acc_ref):
    @pl.when(pl.program_id(2) == 0)
    def _():
        acc_ref[...] = jnp.zeros_like(acc_ref)

    acc_ref[...] += jnp.dot(a_ref[...], b_ref[...],
                            preferred_element_type=jnp.float32)

    @pl.when(pl.program_id(2) == pl.num_programs(2) - 1)
    def _():
        o_ref[...] = acc_ref[...].astype(o_ref.dtype)


def matmul_pallas(a, b, *, compute_dtype=jnp.bfloat16, out_dtype=None,
                  tm_cap=256, tn_cap=512, tk_cap=512):
    """a: [M, K] @ b: [K, N] -> [M, N] with bf16 MXU operands, f32 accumulation."""
    M, K = a.shape
    K2, N = b.shape
    assert K == K2
    assert N % 128 == 0 and K % 128 == 0, \
        "matmul dims must be lane-dense (multiples of 128)"
    out_dtype = out_dtype or a.dtype

    # tm up to 256 saturates the v6e/v7x MXU rows; 128 already saturates v5e.
    tm = min(tm_cap, _round_up(M, 8))
    tn = _pick_tile(N, tn_cap)
    tk = _pick_tile(K, tk_cap)
    m_pad = _round_up(M, tm)
    if m_pad != M:
        a = jnp.pad(a, ((0, m_pad - M), (0, 0)))
    a_c = a.astype(compute_dtype)
    b_c = b.astype(compute_dtype)

    out = pl.pallas_call(
        _matmul_kernel,
        out_shape=jax.ShapeDtypeStruct((m_pad, N), out_dtype),
        grid_spec=pltpu.PrefetchScalarGridSpec(
            num_scalar_prefetch=0,
            grid=(m_pad // tm, N // tn, K // tk),
            in_specs=[
                pl.BlockSpec((tm, tk), lambda i, j, k: (i, k)),
                pl.BlockSpec((tk, tn), lambda i, j, k: (k, j)),
            ],
            out_specs=pl.BlockSpec((tm, tn), lambda i, j, k: (i, j)),
            scratch_shapes=[pltpu.VMEM((tm, tn), jnp.float32)],
        ),
        compiler_params=pltpu.CompilerParams(
            dimension_semantics=("parallel", "parallel", "arbitrary"),
            vmem_limit_bytes=64 * 1024 * 1024),
    )(a_c, b_c)
    return out[:M] if m_pad != M else out


# ----------------------------------------------------------------------------
# Flash attention over the KV cache (online softmax, GQA by stacking the
# n_rep query heads of a group along the row dimension)
# ----------------------------------------------------------------------------
def flash_attention_cache_pallas(q, k_cache, v_cache, q_pos, *, kv_len,
                                 block_kv=512, compute_dtype=jnp.bfloat16,
                                 out_dtype=None):
    """q: [B, Hkv, n_rep*Sq, D]; k_cache/v_cache: [B, Hkv, S_max, D] (rotated).

    q_pos: [n_rep*Sq, 1] int32 absolute query positions (causal mask rows).
    Attends each q row to cache positions [0, kv_len) with key_pos <= q_pos.
    """
    bsz, n_kv, gs, hd = q.shape          # gs = n_rep * seqlen
    _, _, s_max, _ = k_cache.shape
    assert s_max % 8 == 0, "cache max_seq_len must be a multiple of 8"
    out_dtype = out_dtype or q.dtype
    scale = 1.0 / math.sqrt(hd)
    approx = jnp.dtype(compute_dtype) != jnp.dtype(jnp.float32)

    block_kv = min(block_kv, s_max)
    while s_max % block_kv:
        block_kv -= 8
    num_kv_blocks = pl.cdiv(kv_len, block_kv)   # only stream the live cache

    def kernel(qpos_ref, q_ref, k_ref, v_ref, o_ref, m_sc, l_sc, acc_sc):
        kb = pl.program_id(2)

        @pl.when(kb == 0)
        def _():
            m_sc[...] = jnp.full(m_sc.shape, -jnp.inf, m_sc.dtype)
            l_sc[...] = jnp.zeros(l_sc.shape, l_sc.dtype)
            acc_sc[...] = jnp.zeros(acc_sc.shape, acc_sc.dtype)

        qb = q_ref[0, 0]          # [gs, hd]
        kb_blk = k_ref[0, 0]      # [block_kv, hd]
        vb = v_ref[0, 0]

        s = lax.dot_general(qb, kb_blk, (((1,), (1,)), ((), ())),
                            preferred_element_type=jnp.float32) * scale
        k_pos = kb * block_kv + lax.broadcasted_iota(jnp.int32, s.shape, 1)
        q_pos_col = qpos_ref[...]                     # [gs, 1] int32
        s = jnp.where((k_pos <= q_pos_col) & (k_pos < kv_len), s, -1e30)

        m_prev = m_sc[...]
        m_new = jnp.maximum(m_prev, s.max(axis=-1, keepdims=True))
        alpha = jnp.exp(m_prev - m_new)
        p = jnp.exp(s - m_new)
        l_sc[...] = alpha * l_sc[...] + p.sum(axis=-1, keepdims=True)
        acc_sc[...] = alpha * acc_sc[...] + jnp.dot(
            p.astype(vb.dtype), vb, preferred_element_type=jnp.float32)
        m_sc[...] = m_new

        @pl.when(kb == pl.num_programs(2) - 1)
        def _():
            o_ref[0, 0] = (acc_sc[...] *
                           pl.reciprocal(l_sc[...], approx=approx)
                           ).astype(o_ref.dtype)

    q_c = q.astype(compute_dtype)
    k_c = k_cache.astype(compute_dtype)
    v_c = v_cache.astype(compute_dtype)

    return pl.pallas_call(
        kernel,
        out_shape=jax.ShapeDtypeStruct((bsz, n_kv, gs, hd), out_dtype),
        grid_spec=pltpu.PrefetchScalarGridSpec(
            num_scalar_prefetch=0,
            grid=(bsz, n_kv, num_kv_blocks),
            in_specs=[
                pl.BlockSpec((gs, 1), lambda b, h, kb: (0, 0)),
                pl.BlockSpec((1, 1, gs, hd), lambda b, h, kb: (b, h, 0, 0)),
                pl.BlockSpec((1, 1, block_kv, hd),
                             lambda b, h, kb: (b, h, kb, 0)),
                pl.BlockSpec((1, 1, block_kv, hd),
                             lambda b, h, kb: (b, h, kb, 0)),
            ],
            out_specs=pl.BlockSpec((1, 1, gs, hd),
                                   lambda b, h, kb: (b, h, 0, 0)),
            scratch_shapes=[
                pltpu.VMEM((gs, 1), jnp.float32),
                pltpu.VMEM((gs, 1), jnp.float32),
                pltpu.VMEM((gs, hd), jnp.float32),
            ],
        ),
        compiler_params=pltpu.CompilerParams(
            dimension_semantics=("parallel", "parallel", "arbitrary"),
            vmem_limit_bytes=64 * 1024 * 1024),
    )(q_pos, q_c, k_c, v_c)


# ----------------------------------------------------------------------------
# RoPE (interleaved pairs, matches torch.view_as_complex on reshape(..., -1, 2))
# ----------------------------------------------------------------------------
def precompute_rope(head_dim, positions, theta=500000.0):
    inv_freq = 1.0 / (theta ** (jnp.arange(0, head_dim, 2, dtype=jnp.float32)
                                / head_dim))
    angles = positions.astype(jnp.float32)[:, None] * inv_freq[None, :]
    return jnp.cos(angles), jnp.sin(angles)       # each [seqlen, head_dim // 2]


# TODO(synk): the interleaved-pair RoPE rotation and the KV-cache
# dynamic_update_slice are applied in plain JAX (elementwise / data movement);
# fusing the in-lane pair swap into the QKV Pallas kernel isn't worth the
# layout churn at these sizes.
def apply_rope(x, cos, sin):
    b, s, h, d = x.shape
    xf = x.astype(jnp.float32).reshape(b, s, h, d // 2, 2)
    xe, xo = xf[..., 0], xf[..., 1]
    c = cos[None, :, None, :]
    sn = sin[None, :, None, :]
    oe = xe * c - xo * sn
    oo = xe * sn + xo * c
    return jnp.stack([oe, oo], axis=-1).reshape(b, s, h, d).astype(x.dtype)


# ----------------------------------------------------------------------------
# Full Attention.forward
# ----------------------------------------------------------------------------
def attention_forward_pallas(x, start_pos, cos, sin, wq, wk, wv, wo,
                             cache_k, cache_v, *, n_heads, n_kv_heads,
                             compute_dtype=jnp.bfloat16, block_kv=512):
    bsz, seqlen, dim = x.shape
    head_dim = dim // n_heads
    n_rep = n_heads // n_kv_heads
    q_dim = n_heads * head_dim
    kv_dim = n_kv_heads * head_dim
    kv_len = start_pos + seqlen

    # Fused QKV projection: one MXU pass over [dim, (H + 2*Hkv) * head_dim].
    wqkv = jnp.concatenate([wq, wk, wv], axis=1)
    xf = x.reshape(bsz * seqlen, dim)
    qkv = matmul_pallas(xf, wqkv, compute_dtype=compute_dtype, out_dtype=x.dtype)
    xq = qkv[:, :q_dim].reshape(bsz, seqlen, n_heads, head_dim)
    xk = qkv[:, q_dim:q_dim + kv_dim].reshape(bsz, seqlen, n_kv_heads, head_dim)
    xv = qkv[:, q_dim + kv_dim:].reshape(bsz, seqlen, n_kv_heads, head_dim)

    xq = apply_rope(xq, cos, sin)
    xk = apply_rope(xk, cos, sin)

    # KV-cache update.
    cache_k = lax.dynamic_update_slice(cache_k, xk.astype(cache_k.dtype),
                                       (0, start_pos, 0, 0))
    cache_v = lax.dynamic_update_slice(cache_v, xv.astype(cache_v.dtype),
                                       (0, start_pos, 0, 0))

    # Cache as [B, Hkv, S_max, D]; q grouped as [B, Hkv, n_rep*Sq, D] so all
    # query heads sharing a KV head go through one kernel invocation.
    k_t = jnp.transpose(cache_k[:bsz], (0, 2, 1, 3))
    v_t = jnp.transpose(cache_v[:bsz], (0, 2, 1, 3))
    q_t = jnp.transpose(xq, (0, 2, 1, 3))                     # [B, H, Sq, D]
    q_g = q_t.reshape(bsz, n_kv_heads, n_rep * seqlen, head_dim)

    # Absolute query position of each stacked row (row = g*Sq + s -> pos s).
    q_pos = (start_pos
             + jnp.tile(jnp.arange(seqlen, dtype=jnp.int32), n_rep)
             ).reshape(n_rep * seqlen, 1)

    attn = flash_attention_cache_pallas(
        q_g, k_t, v_t, q_pos, kv_len=kv_len, block_kv=block_kv,
        compute_dtype=compute_dtype, out_dtype=x.dtype)

    attn = attn.reshape(bsz, n_heads, seqlen, head_dim)
    attn = jnp.transpose(attn, (0, 2, 1, 3)).reshape(bsz * seqlen, q_dim)
    out = matmul_pallas(attn, wo, compute_dtype=compute_dtype, out_dtype=x.dtype)
    return out.reshape(bsz, seqlen, dim), cache_k, cache_v


# ----------------------------------------------------------------------------
# Pure-JAX reference mirroring the PyTorch forward
# ----------------------------------------------------------------------------
def attention_reference(x, start_pos, cos, sin, wq, wk, wv, wo,
                        cache_k, cache_v, *, n_heads, n_kv_heads):
    P = lax.Precision.HIGHEST
    bsz, seqlen, dim = x.shape
    head_dim = dim // n_heads
    n_rep = n_heads // n_kv_heads
    xq = jnp.dot(x, wq, precision=P).reshape(bsz, seqlen, n_heads, head_dim)
    xk = jnp.dot(x, wk, precision=P).reshape(bsz, seqlen, n_kv_heads, head_dim)
    xv = jnp.dot(x, wv, precision=P).reshape(bsz, seqlen, n_kv_heads, head_dim)
    xq = apply_rope(xq, cos, sin)
    xk = apply_rope(xk, cos, sin)
    cache_k = lax.dynamic_update_slice(cache_k, xk, (0, start_pos, 0, 0))
    cache_v = lax.dynamic_update_slice(cache_v, xv, (0, start_pos, 0, 0))
    kv_len = start_pos + seqlen
    keys = jnp.repeat(cache_k[:bsz, :kv_len], n_rep, axis=2)    # repeat_kv
    values = jnp.repeat(cache_v[:bsz, :kv_len], n_rep, axis=2)
    q = jnp.transpose(xq, (0, 2, 1, 3))
    k = jnp.transpose(keys, (0, 2, 1, 3))
    v = jnp.transpose(values, (0, 2, 1, 3))
    scores = jnp.einsum("bhqd,bhkd->bhqk", q, k, precision=P) / math.sqrt(head_dim)
    causal = jnp.tril(jnp.ones((seqlen, seqlen), bool))
    mask = jnp.concatenate(
        [jnp.zeros((seqlen, start_pos), scores.dtype),
         jnp.where(causal, 0.0, -jnp.inf).astype(scores.dtype)], axis=1)
    scores = scores + mask[None, None]
    probs = jax.nn.softmax(scores.astype(jnp.float32), axis=-1).astype(q.dtype)
    out = jnp.einsum("bhqk,bhkd->bhqd", probs, v, precision=P)
    out = jnp.transpose(out, (0, 2, 1, 3)).reshape(bsz, seqlen, -1)
    return jnp.dot(out, wo, precision=P), cache_k, cache_v


if __name__ == "__main__":
    # Small llama-style config: dim=256, 2 query heads / 1 kv head (GQA n_rep=2),
    # head_dim=128 (lane-dense), batch=2, seqlen=8, cache max_seq_len=16,
    # start_pos=4 with a pre-populated cache prefix.
    dim, n_heads, n_kv_heads = 256, 2, 1
    head_dim = dim // n_heads
    bsz, seqlen = 2, 8
    max_batch, max_seq = 4, 16
    start_pos = 4
    rope_theta = 500000.0

    key = jax.random.PRNGKey(0)
    k0, k1, k2, k3, k4, k5, k6 = jax.random.split(key, 7)
    x = jax.random.normal(k0, (bsz, seqlen, dim), dtype=jnp.float32)
    wq = jax.random.normal(k1, (dim, n_heads * head_dim), jnp.float32) * 0.05
    wk = jax.random.normal(k2, (dim, n_kv_heads * head_dim), jnp.float32) * 0.05
    wv = jax.random.normal(k3, (dim, n_kv_heads * head_dim), jnp.float32) * 0.05
    wo = jax.random.normal(k4, (n_heads * head_dim, dim), jnp.float32) * 0.05

    cache_k = jnp.zeros((max_batch, max_seq, n_kv_heads, head_dim), jnp.float32)
    cache_v = jnp.zeros((max_batch, max_seq, n_kv_heads, head_dim), jnp.float32)
    cache_k = cache_k.at[:bsz, :start_pos].set(
        jax.random.normal(k5, (bsz, start_pos, n_kv_heads, head_dim), jnp.float32))
    cache_v = cache_v.at[:bsz, :start_pos].set(
        jax.random.normal(k6, (bsz, start_pos, n_kv_heads, head_dim), jnp.float32))

    positions = jnp.arange(start_pos, start_pos + seqlen)
    cos, sin = precompute_rope(head_dim, positions, theta=rope_theta)

    ref_out, ref_ck, ref_cv = attention_reference(
        x, start_pos, cos, sin, wq, wk, wv, wo, cache_k, cache_v,
        n_heads=n_heads, n_kv_heads=n_kv_heads)

    # 1) f32 compute path: strict numerical check (block_kv=8 -> 2 kv blocks,
    #    exercising the online-softmax accumulation and the partial last block).
    out32, ck32, cv32 = attention_forward_pallas(
        x, start_pos, cos, sin, wq, wk, wv, wo, cache_k, cache_v,
        n_heads=n_heads, n_kv_heads=n_kv_heads,
        compute_dtype=jnp.float32, block_kv=8)
    out32 = jax.block_until_ready(out32)
    assert out32.shape == (bsz, seqlen, dim)
    assert jnp.allclose(out32, ref_out, atol=1e-3, rtol=1e-3), "f32 output mismatch"
    assert jnp.allclose(ck32, ref_ck, atol=1e-3, rtol=1e-3), "cache_k mismatch"
    assert jnp.allclose(cv32, ref_cv, atol=1e-3, rtol=1e-3), "cache_v mismatch"

    # 2) bf16 MXU operands with f32 accumulation — the production-perf path.
    out16, _, _ = attention_forward_pallas(
        x, start_pos, cos, sin, wq, wk, wv, wo, cache_k, cache_v,
        n_heads=n_heads, n_kv_heads=n_kv_heads,
        compute_dtype=jnp.bfloat16, block_kv=8)
    out16 = jax.block_until_ready(out16)
    assert jnp.allclose(out16, ref_out, atol=5e-2, rtol=5e-2), "bf16 output mismatch"

    print("KERNEL_OK")
</pallas_src>

<mosaic_0001>
module attributes {stable_mosaic.version = 11 : i64} {
  func.func @_matmul_kernel(%arg0: i32, %arg1: i32, %arg2: i32, %arg3: memref<16x256xf32, #tpu.memory_space<vmem>>, %arg4: memref<256x512xf32, #tpu.memory_space<vmem>>, %arg5: memref<16x512xf32, #tpu.memory_space<vmem>>, %arg6: memref<16x512xf32, #tpu.memory_space<vmem>>) attributes {dimension_semantics = [#tpu.dimension_semantics<parallel>, #tpu.dimension_semantics<parallel>, #tpu.dimension_semantics<arbitrary>], iteration_bounds = array<i64: 1, 1, 1>, scalar_prefetch = 0 : i64, scratch_operands = 1 : i64, tpu.core_type = #tpu.core_type<tc>, window_params = [{transform_indices = @transform_0, window_bounds = array<i64: 16, 256>}, {transform_indices = @transform_1, window_bounds = array<i64: 256, 512>}, {transform_indices = @transform_2, window_bounds = array<i64: 16, 512>}]} {
    %c0_i32 = arith.constant 0 : i32
    %0 = arith.cmpi eq, %arg2, %c0_i32 : i32
    %1 = arith.extui %0 : i1 to i32
    %c0_i32_0 = arith.constant 0 : i32
    %2 = arith.cmpi ne, %1, %c0_i32_0 : i32
    scf.if %2 {
      %cst_10 = arith.constant 0.000000e+00 : f32
      %12 = vector.broadcast %cst_10 : f32 to vector<16x512xf32>
      %c0_11 = arith.constant 0 : index
      %c0_12 = arith.constant 0 : index
      %13 = vector.load %arg6[%c0_11, %c0_12] : memref<16x512xf32, #tpu.memory_space<vmem>>, vector<16x512xf32>
      tpu.vector_store %arg6[%c0_11, %c0_12], %12 {strides = array<i32>} : memref<16x512xf32, #tpu.memory_space<vmem>>, vector<16x512xf32>,
    } else {
    }
    %c0 = arith.constant 0 : index
    %c0_1 = arith.constant 0 : index
    %3 = vector.load %arg6[%c0, %c0_1] : memref<16x512xf32, #tpu.memory_space<vmem>>, vector<16x512xf32>
    %c0_2 = arith.constant 0 : index
    %c0_3 = arith.constant 0 : index
    %4 = vector.load %arg3[%c0_2, %c0_3] : memref<16x256xf32, #tpu.memory_space<vmem>>, vector<16x256xf32>
    %c0_4 = arith.constant 0 : index
    %c0_5 = arith.constant 0 : index
    %5 = vector.load %arg4[%c0_4, %c0_5] : memref<256x512xf32, #tpu.memory_space<vmem>>, vector<256x512xf32>
    %cst = arith.constant dense<0.000000e+00> : vector<16x512xf32>
    %6 = tpu.matmul %4, %5, %cst {dimension_numbers = #tpu.dot_dimension_numbers<[1], [0], [0], [1], [0, 0, 1, 1], [], []>} : vector<16x256xf32>, vector<256x512xf32>, vector<16x512xf32> -> vector<16x512xf32>
    %7 = arith.addf %3, %6 : vector<16x512xf32>
    %c0_6 = arith.constant 0 : index
    %c0_7 = arith.constant 0 : index
    %8 = vector.load %arg6[%c0_6, %c0_7] : memref<16x512xf32, #tpu.memory_space<vmem>>, vector<16x512xf32>
    tpu.vector_store %arg6[%c0_6, %c0_7], %7 {strides = array<i32>} : memref<16x512xf32, #tpu.memory_space<vmem>>, vector<16x512xf32>,
    %c0_i32_8 = arith.constant 0 : i32
    %9 = arith.cmpi eq, %arg2, %c0_i32_8 : i32
    %10 = arith.extui %9 : i1 to i32
    %c0_i32_9 = arith.constant 0 : i32
    %11 = arith.cmpi ne, %10, %c0_i32_9 : i32
    scf.if %11 {
      %c0_10 = arith.constant 0 : index
      %c0_11 = arith.constant 0 : index
      %12 = vector.load %arg6[%c0_10, %c0_11] : memref<16x512xf32, #tpu.memory_space<vmem>>, vector<16x512xf32>
      %c0_12 = arith.constant 0 : index
      %c0_13 = arith.constant 0 : index
      %13 = vector.load %arg5[%c0_12, %c0_13] : memref<16x512xf32, #tpu.memory_space<vmem>>, vector<16x512xf32>
      tpu.vector_store %arg5[%c0_12, %c0_13], %12 {strides = array<i32>} : memref<16x512xf32, #tpu.memory_space<vmem>>, vector<16x512xf32>,
    } else {
    }
    return
  }
  func.func @transform_0(%arg0: i32, %arg1: i32, %arg2: i32) -> (i32, i32) {
    %c0_i32 = arith.constant 0 : i32
    return %arg0, %arg2 : i32, i32
  }
  func.func @transform_1(%arg0: i32, %arg1: i32, %arg2: i32) -> (i32, i32) {
    %c0_i32 = arith.constant 0 : i32
    return %arg2, %arg1 : i32, i32
  }
  func.func @transform_2(%arg0: i32, %arg1: i32, %arg2: i32) -> (i32, i32) {
    %c0_i32 = arith.constant 0 : i32
    return %arg0, %arg1 : i32, i32
  }
}

</mosaic_0001>

<llo_original>
// kernel: tpu_custom_call.1
$region0: #{tpu_custom_call.1}
  #allocation0 [shape = 'u32[]', space=smem, size = 0x4, offset = 0x4, fixed_abs, tag = 'smem constant byte address 0x4 - core index']
  #allocation1 [shape = 'u32[144,128]{1,0:T(1,128)}', space=vmem, size = 0x12000, scoped, tag = 'internal scratch']
  #allocation2 [shape = 'f32[16,512]{1,0:T(8,128)}', space=vmem, size = 0x8000, scoped, tag = 'scratch operand']
  %s0 = inlined_call_operand.hbm [shape: f32[16,256], index: 0, kind: input, shape index: {}]
  %s1 = inlined_call_operand.hbm [shape: f32[256,512], index: 1, kind: input, shape index: {}]
  %s2 = inlined_call_operand.hbm [shape: f32[16,512], index: 2, kind: output, shape index: {}]
  %s3 = sld [smem:[#allocation0]]
  $region34: #{tpu_custom_call.1} parent=0
    _
  %s5 = ssub.s32 1, %s3
  %s6 = scalar_select 0, %s5, %s3
  $region1: #{tpu_custom_call.1} parent=0
    #allocation3 [shape = 'u8[16384]{0}', space=vmem, size = 0x4000, scoped, tag = 'input window, operand 0, single buffered']
    #allocation4 [shape = 's32[1]{0}', space=sflag, size = 0x4, scoped, tag = 'scoped memory for tpu_custom_call.1']
    #allocation5 [shape = 's32[1]{0}', space=sflag, size = 0x4, scoped, tag = 'scoped memory for tpu_custom_call.1']
    #allocation6 [shape = 'u8[524288]{0}', space=vmem, size = 0x80000, scoped, tag = 'input window, operand 1, single buffered']
    #allocation7 [shape = 's32[1]{0}', space=sflag, size = 0x4, scoped, tag = 'scoped memory for tpu_custom_call.1']
    #allocation8 [shape = 'u8[32768]{0}', space=vmem, size = 0x8000, scoped, tag = 'output window, operand 0, single buffered']
    %7 = vsyncpa [#allocation4], 0
    %8 = vsyncpa [#allocation7], 0
    %9 = vsyncpa [#allocation5], 0
    // Predicated region
    $region2: #{tpu_custom_call.1} parent=1 // pred_check
      _
    $region3: #{tpu_custom_call.1} parent=1 // pred_check_branch
      %11 = sbr.rel (0) target = $region5
    $region4: #{tpu_custom_call.1} parent=1 // pred_region
      %s13 = ssub.s32 512, 512
      %14 = vsyncadd [#allocation4], %s13
      %s15 = sshll.u32 [#allocation3], 4
      %s16 = int_to_ptr.vmem [resolvable:$true] %s15
      %21 = dma.hbm_to_vmem [thread:$0]  %s0, 512, %s16, [#allocation4], 256, 256, 16
    $region5: #{tpu_custom_call.1} parent=1 // pred_fallthru
      _
    // Predicated region
    $region6: #{tpu_custom_call.1} parent=1 // pred_check
      _
    $region7: #{tpu_custom_call.1} parent=1 // pred_check_branch
      %23 = sbr.rel (0) target = $region9
    $region8: #{tpu_custom_call.1} parent=1 // pred_region
      %s25 = ssub.s32 16384, 16384
      %26 = vsyncadd [#allocation7], %s25
      %s27 = sshll.u32 [#allocation6], 4
      %s28 = int_to_ptr.vmem [resolvable:$true] %s27
      %33 = dma.hbm_to_vmem [thread:$0]  %s1, 16384, %s28, [#allocation7], 512, 512, 32
    $region9: #{tpu_custom_call.1} parent=1 // pred_fallthru
      _
    // Predicated region
    $region10: #{tpu_custom_call.1} parent=1 // pred_check
      _
    $region11: #{tpu_custom_call.1} parent=1 // pred_check_branch
      %35 = sbr.rel (0) target = $region13
    $region12: #{tpu_custom_call.1} parent=1 // pred_region
      %36 = dma.done [#allocation4], 512
    $region13: #{tpu_custom_call.1} parent=1 // pred_fallthru
      _
    // Predicated region
    $region14: #{tpu_custom_call.1} parent=1 // pred_check
      _
    $region15: #{tpu_custom_call.1} parent=1 // pred_check_branch
      %38 = sbr.rel (0) target = $region17
    $region16: #{tpu_custom_call.1} parent=1 // pred_region
      %39 = dma.done [#allocation7], 16384
    $region17: #{tpu_custom_call.1} parent=1 // pred_fallthru
      _
    %p40 = scmp.eq.s32.totalorder 0, 0
    // Predicated region
    $region18: #{tpu_custom_call.1} parent=1 // pred_check
      %p41 = pneg %p40
    $region19: #{tpu_custom_call.1} parent=1 // pred_check_branch
      %43 = sbr.rel (%p41) target = $region21
    $region20: #{tpu_custom_call.1} parent=1 // pred_region
      %44 = vst [vmem:[#allocation2] sm:$0xff] 0.0
      %45 = vst [vmem:[#allocation2 + $0x8] sm:$0xff] 0.0
      %46 = vst [vmem:[#allocation2 + $0x10] sm:$0xff] 0.0
      %47 = vst [vmem:[#allocation2 + $0x18] sm:$0xff] 0.0
      %48 = vst [vmem:[#allocation2 + $0x20] sm:$0xff] 0.0
      %49 = vst [vmem:[#allocation2 + $0x28] sm:$0xff] 0.0
      %50 = vst [vmem:[#allocation2 + $0x30] sm:$0xff] 0.0
      %51 = vst [vmem:[#allocation2 + $0x38] sm:$0xff] 0.0
    $region21: #{tpu_custom_call.1} parent=1 // pred_fallthru
      _
    %v52 = vld [vmem:[#allocation2] sm:$0xff]
    %v53 = vld [vmem:[#allocation2 + $0x8] sm:$0xff]
    %v54 = vld [vmem:[#allocation2 + $0x10] sm:$0xff]
    %v55 = vld [vmem:[#allocation2 + $0x18] sm:$0xff]
    %v56 = vld [vmem:[#allocation2 + $0x20] sm:$0xff]
    %v57 = vld [vmem:[#allocation2 + $0x28] sm:$0xff]
    %v58 = vld [vmem:[#allocation2 + $0x30] sm:$0xff]
    %v59 = vld [vmem:[#allocation2 + $0x38] sm:$0xff]
    %v60 = vld [vmem:[#allocation3] sm:$0xff]
    %v61 = vld [vmem:[#allocation3 + $0x8] sm:$0xff]
    %v62 = vld [vmem:[#allocation3 + $0x10] sm:$0xff]
    %v63 = vld [vmem:[#allocation3 + $0x18] sm:$0xff]
    %v64 = vld [vmem:[#allocation6] sm:$0xff]
    %v65 = vld [vmem:[#allocation6 + $0x8] sm:$0xff]
    %v66 = vld [vmem:[#allocation6 + $0x10] sm:$0xff]
    %v67 = vld [vmem:[#allocation6 + $0x18] sm:$0xff]
    %v68 = vld [vmem:[#allocation6 + $0x20] sm:$0xff]
    %v69 = vld [vmem:[#allocation6 + $0x28] sm:$0xff]
    %v70 = vld [vmem:[#allocation6 + $0x30] sm:$0xff]
    %v71 = vld [vmem:[#allocation6 + $0x38] sm:$0xff]
    %v72 = vld [vmem:[#allocation6 + $0x40] sm:$0xff]
    %v73 = vld [vmem:[#allocation6 + $0x48] sm:$0xff]
    %v74 = vld [vmem:[#allocation6 + $0x50] sm:$0xff]
    %v75 = vld [vmem:[#allocation6 + $0x58] sm:$0xff]
    %v76 = vld [vmem:[#allocation6 + $0x60] sm:$0xff]
    %v77 = vld [vmem:[#allocation6 + $0x68] sm:$0xff]
    %v78 = vld [vmem:[#allocation6 + $0x70] sm:$0xff]
    %v79 = vld [vmem:[#allocation6 + $0x78] sm:$0xff]
    %v80 = vld [vmem:[#allocation6 + $0x80] sm:$0xff]
    %v81 = vld [vmem:[#allocation6 + $0x88] sm:$0xff]
    %v82 = vld [vmem:[#allocation6 + $0x90] sm:$0xff]
    %v83 = vld [vmem:[#allocation6 + $0x98] sm:$0xff]
    %v84 = vld [vmem:[#allocation6 + $0xa0] sm:$0xff]
    %v85 = vld [vmem:[#allocation6 + $0xa8] sm:$0xff]
    %v86 = vld [vmem:[#allocation6 + $0xb0] sm:$0xff]
    %v87 = vld [vmem:[#allocation6 + $0xb8] sm:$0xff]
    %v88 = vld [vmem:[#allocation6 + $0xc0] sm:$0xff]
    %v89 = vld [vmem:[#allocation6 + $0xc8] sm:$0xff]
    %v90 = vld [vmem:[#allocation6 + $0xd0] sm:$0xff]
    %v91 = vld [vmem:[#allocation6 + $0xd8] sm:$0xff]
    %v92 = vld [vmem:[#allocation6 + $0xe0] sm:$0xff]
    %v93 = vld [vmem:[#allocation6 + $0xe8] sm:$0xff]
    %v94 = vld [vmem:[#allocation6 + $0xf0] sm:$0xff]
    %v95 = vld [vmem:[#allocation6 + $0xf8] sm:$0xff]
    %v96 = vld [vmem:[#allocation6 + $0x100] sm:$0xff]
    %v97 = vld [vmem:[#allocation6 + $0x108] sm:$0xff]
    %v98 = vld [vmem:[#allocation6 + $0x110] sm:$0xff]
    %v99 = vld [vmem:[#allocation6 + $0x118] sm:$0xff]
    %v100 = vld [vmem:[#allocation6 + $0x120] sm:$0xff]
    %v101 = vld [vmem:[#allocation6 + $0x128] sm:$0xff]
    %v102 = vld [vmem:[#allocation6 + $0x130] sm:$0xff]
    %v103 = vld [vmem:[#allocation6 + $0x138] sm:$0xff]
    %v104 = vld [vmem:[#allocation6 + $0x140] sm:$0xff]
    %v105 = vld [vmem:[#allocation6 + $0x148] sm:$0xff]
    %v106 = vld [vmem:[#allocation6 + $0x150] sm:$0xff]
    %v107 = vld [vmem:[#allocation6 + $0x158] sm:$0xff]
    %v108 = vld [vmem:[#allocation6 + $0x160] sm:$0xff]
    %v109 = vld [vmem:[#allocation6 + $0x168] sm:$0xff]
    %v110 = vld [vmem:[#allocation6 + $0x170] sm:$0xff]
    %v111 = vld [vmem:[#allocation6 + $0x178] sm:$0xff]
    %v112 = vld [vmem:[#allocation6 + $0x180] sm:$0xff]
    %v113 = vld [vmem:[#allocation6 + $0x188] sm:$0xff]
    %v114 = vld [vmem:[#allocation6 + $0x190] sm:$0xff]
    %v115 = vld [vmem:[#allocation6 + $0x198] sm:$0xff]
    %v116 = vld [vmem:[#allocation6 + $0x1a0] sm:$0xff]
    %v117 = vld [vmem:[#allocation6 + $0x1a8] sm:$0xff]
    %v118 = vld [vmem:[#allocation6 + $0x1b0] sm:$0xff]
    %v119 = vld [vmem:[#allocation6 + $0x1b8] sm:$0xff]
    %v120 = vld [vmem:[#allocation6 + $0x1c0] sm:$0xff]
    %v121 = vld [vmem:[#allocation6 + $0x1c8] sm:$0xff]
    %v122 = vld [vmem:[#allocation6 + $0x1d0] sm:$0xff]
    %v123 = vld [vmem:[#allocation6 + $0x1d8] sm:$0xff]
    %v124 = vld [vmem:[#allocation6 + $0x1e0] sm:$0xff]
    %v125 = vld [vmem:[#allocation6 + $0x1e8] sm:$0xff]
    %v126 = vld [vmem:[#allocation6 + $0x1f0] sm:$0xff]
    %v127 = vld [vmem:[#allocation6 + $0x1f8] sm:$0xff]
    %v128 = vld [vmem:[#allocation6 + $0x200] sm:$0xff]
    %v129 = vld [vmem:[#allocation6 + $0x208] sm:$0xff]
    %v130 = vld [vmem:[#allocation6 + $0x210] sm:$0xff]
    %v131 = vld [vmem:[#allocation6 + $0x218] sm:$0xff]
    %v132 = vld [vmem:[#allocation6 + $0x220] sm:$0xff]
    %v133 = vld [vmem:[#allocation6 + $0x228] sm:$0xff]
    %v134 = vld [vmem:[#allocation6 + $0x230] sm:$0xff]
    %v135 = vld [vmem:[#allocation6 + $0x238] sm:$0xff]
    %v136 = vld [vmem:[#allocation6 + $0x240] sm:$0xff]
    %v137 = vld [vmem:[#allocation6 + $0x248] sm:$0xff]
    %v138 = vld [vmem:[#allocation6 + $0x250] sm:$0xff]
    %v139 = vld [vmem:[#allocation6 + $0x258] sm:$0xff]
    %v140 = vld [vmem:[#allocation6 + $0x260] sm:$0xff]
    %v141 = vld [vmem:[#allocation6 + $0x268] sm:$0xff]
    %v142 = vld [vmem:[#allocation6 + $0x270] sm:$0xff]
    %v143 = vld [vmem:[#allocation6 + $0x278] sm:$0xff]
    %v144 = vld [vmem:[#allocation6 + $0x280] sm:$0xff]
    %v145 = vld [vmem:[#allocation6 + $0x288] sm:$0xff]
    %v146 = vld [vmem:[#allocation6 + $0x290] sm:$0xff]
    %v147 = vld [vmem:[#allocation6 + $0x298] sm:$0xff]
    %v148 = vld [vmem:[#allocation6 + $0x2a0] sm:$0xff]
    %v149 = vld [vmem:[#allocation6 + $0x2a8] sm:$0xff]
    %v150 = vld [vmem:[#allocation6 + $0x2b0] sm:$0xff]
    %v151 = vld [vmem:[#allocation6 + $0x2b8] sm:$0xff]
    %v152 = vld [vmem:[#allocation6 + $0x2c0] sm:$0xff]
    %v153 = vld [vmem:[#allocation6 + $0x2c8] sm:$0xff]
    %v154 = vld [vmem:[#allocation6 + $0x2d0] sm:$0xff]
    %v155 = vld [vmem:[#allocation6 + $0x2d8] sm:$0xff]
    %v156 = vld [vmem:[#allocation6 + $0x2e0] sm:$0xff]
    %v157 = vld [vmem:[#allocation6 + $0x2e8] sm:$0xff]
    %v158 = vld [vmem:[#allocation6 + $0x2f0] sm:$0xff]
    %v159 = vld [vmem:[#allocation6 + $0x2f8] sm:$0xff]
    %v160 = vld [vmem:[#allocation6 + $0x300] sm:$0xff]
    %v161 = vld [vmem:[#allocation6 + $0x308] sm:$0xff]
    %v162 = vld [vmem:[#allocation6 + $0x310] sm:$0xff]
    %v163 = vld [vmem:[#allocation6 + $0x318] sm:$0xff]
    %v164 = vld [vmem:[#allocation6 + $0x320] sm:$0xff]
    %v165 = vld [vmem:[#allocation6 + $0x328] sm:$0xff]
    %v166 = vld [vmem:[#allocation6 + $0x330] sm:$0xff]
    %v167 = vld [vmem:[#allocation6 + $0x338] sm:$0xff]
    %v168 = vld [vmem:[#allocation6 + $0x340] sm:$0xff]
    %v169 = vld [vmem:[#allocation6 + $0x348] sm:$0xff]
    %v170 = vld [vmem:[#allocation6 + $0x350] sm:$0xff]
    %v171 = vld [vmem:[#allocation6 + $0x358] sm:$0xff]
    %v172 = vld [vmem:[#allocation6 + $0x360] sm:$0xff]
    %v173 = vld [vmem:[#allocation6 + $0x368] sm:$0xff]
    %v174 = vld [vmem:[#allocation6 + $0x370] sm:$0xff]
    %v175 = vld [vmem:[#allocation6 + $0x378] sm:$0xff]
    %v176 = vld [vmem:[#allocation6 + $0x380] sm:$0xff]
    %v177 = vld [vmem:[#allocation6 + $0x388] sm:$0xff]
    %v178 = vld [vmem:[#allocation6 + $0x390] sm:$0xff]
    %v179 = vld [vmem:[#allocation6 + $0x398] sm:$0xff]
    %v180 = vld [vmem:[#allocation6 + $0x3a0] sm:$0xff]
    %v181 = vld [vmem:[#allocation6 + $0x3a8] sm:$0xff]
    %v182 = vld [vmem:[#allocation6 + $0x3b0] sm:$0xff]
    %v183 = vld [vmem:[#allocation6 + $0x3b8] sm:$0xff]
    %v184 = vld [vmem:[#allocation6 + $0x3c0] sm:$0xff]
    %v185 = vld [vmem:[#allocation6 + $0x3c8] sm:$0xff]
    %v186 = vld [vmem:[#allocation6 + $0x3d0] sm:$0xff]
    %v187 = vld [vmem:[#allocation6 + $0x3d8] sm:$0xff]
    %v188 = vld [vmem:[#allocation6 + $0x3e0] sm:$0xff]
    %v189 = vld [vmem:[#allocation6 + $0x3e8] sm:$0xff]
    %v190 = vld [vmem:[#allocation6 + $0x3f0] sm:$0xff]
    %v191 = vld [vmem:[#allocation6 + $0x3f8] sm:$0xff]
    %192 = vmatprep.subr.mxu0 %v65
    %193 = vmatpush1.msra.mxu0 %v64
    %194 = vmatprep.subr.mxu0 %v69
    %195 = vmatpush1.msra.mxu0 %v68
    %196 = vmatprep.subr.mxu0 %v73
    %197 = vmatpush1.msra.mxu0 %v72
    %198 = vmatprep.subr.mxu0 %v77
    %199 = vmatpush1.msra.mxu0 %v76
    %200 = vmatprep.subr.mxu0 %v81
    %201 = vmatpush1.msra.mxu0 %v80
    %202 = vmatprep.subr.mxu0 %v85
    %203 = vmatpush1.msra.mxu0 %v84
    %204 = vmatprep.subr.mxu0 %v89
    %205 = vmatpush1.msra.mxu0 %v88
    %206 = vmatprep.subr.mxu0 %v93
    %207 = vmatpush1.msra.mxu0 %v92
    %208 = vmatprep.subr.mxu0 %v97
    %209 = vmatpush1.msra.mxu0 %v96
    %210 = vmatprep.subr.mxu0 %v101
    %211 = vmatpush1.msra.mxu0 %v100
    %212 = vmatprep.subr.mxu0 %v105
    %213 = vmatpush1.msra.mxu0 %v104
    %214 = vmatprep.subr.mxu0 %v109
    %215 = vmatpush1.msra.mxu0 %v108
    %216 = vmatprep.subr.mxu0 %v113
    %217 = vmatpush1.msra.mxu0 %v112
    %218 = vmatprep.subr.mxu0 %v117
    %219 = vmatpush1.msra.mxu0 %v116
    %220 = vmatprep.subr.mxu0 %v121
    %221 = vmatpush1.msra.mxu0 %v120
    %222 = vmatprep.subr.mxu0 %v125
    %223 = vmatpush1.msra.mxu0 %v124
    %224 = vmatprep.subr.mxu0 %v129
    %225 = vmatpush1.msra.mxu0 %v128
    %226 = vmatprep.subr.mxu0 %v133
    %227 = vmatpush1.msra.mxu0 %v132
    %228 = vmatprep.subr.mxu0 %v137
    %229 = vmatpush1.msra.mxu0 %v136
    %230 = vmatprep.subr.mxu0 %v141
    %231 = vmatpush1.msra.mxu0 %v140
    %232 = vmatprep.subr.mxu0 %v145
    %233 = vmatpush1.msra.mxu0 %v144
    %234 = vmatprep.subr.mxu0 %v149
    %235 = vmatpush1.msra.mxu0 %v148
    %236 = vmatprep.subr.mxu0 %v153
    %237 = vmatpush1.msra.mxu0 %v152
    %238 = vmatprep.subr.mxu0 %v157
    %239 = vmatpush1.msra.mxu0 %v156
    %240 = vmatprep.subr.mxu0 %v161
    %241 = vmatpush1.msra.mxu0 %v160
    %242 = vmatprep.subr.mxu0 %v165
    %243 = vmatpush1.msra.mxu0 %v164
    %244 = vmatprep.subr.mxu0 %v169
    %245 = vmatpush1.msra.mxu0 %v168
    %246 = vmatprep.subr.mxu0 %v173
    %247 = vmatpush1.msra.mxu0 %v172
    %248 = vmatprep.subr.mxu0 %v177
    %249 = vmatpush1.msra.mxu0 %v176
    %250 = vmatprep.subr.mxu0 %v181
    %251 = vmatpush1.msra.mxu0 %v180
    %252 = vmatprep.subr.mxu0 %v185
    %253 = vmatpush1.msra.mxu0 %v184
    %254 = vmatprep.subr.mxu0 %v189
    %255 = vmatpush1.msra.mxu0 %v188
    %256 = vmatprep.mubr.f32.mxu0 %v61
    %257 = vmatmul.mubr.f32.gmra.mrb[0].mxu0 %v60
    %v258 = vpop.f32.mrb[0].mxu0
    %v259 = vadd.f32 0.0, %v258
    %v260 = vpop.f32.mrb[0].mxu0
    %v261 = vadd.f32 0.0, %v260
    %262 = vmatprep.mubr.f32.mxu0 %v63
    %263 = vmatmul.mubr.f32.gmra.mrb[0].mxu0 %v62
    %v264 = vpop.f32.mrb[0].mxu0
    %v265 = vadd.f32 0.0, %v264
    %v266 = vpop.f32.mrb[0].mxu0
    %v267 = vadd.f32 0.0, %v266
    %268 = vdwg.mxu0
    %269 = vmatprep.subr.mxu0 %v67
    %270 = vmatpush1.msra.mxu0 %v66
    %271 = vmatprep.subr.mxu0 %v71
    %272 = vmatpush1.msra.mxu0 %v70
    %273 = vmatprep.subr.mxu0 %v75
    %274 = vmatpush1.msra.mxu0 %v74
    %275 = vmatprep.subr.mxu0 %v79
    %276 = vmatpush1.msra.mxu0 %v78
    %277 = vmatprep.subr.mxu0 %v83
    %278 = vmatpush1.msra.mxu0 %v82
    %279 = vmatprep.subr.mxu0 %v87
    %280 = vmatpush1.msra.mxu0 %v86
    %281 = vmatprep.subr.mxu0 %v91
    %282 = vmatpush1.msra.mxu0 %v90
    %283 = vmatprep.subr.mxu0 %v95
    %284 = vmatpush1.msra.mxu0 %v94
    %285 = vmatprep.subr.mxu0 %v99
    %286 = vmatpush1.msra.mxu0 %v98
    %287 = vmatprep.subr.mxu0 %v103
    %288 = vmatpush1.msra.mxu0 %v102
    %289 = vmatprep.subr.mxu0 %v107
    %290 = vmatpush1.msra.mxu0 %v106
    %291 = vmatprep.subr.mxu0 %v111
    %292 = vmatpush1.msra.mxu0 %v110
    %293 = vmatprep.subr.mxu0 %v115
    %294 = vmatpush1.msra.mxu0 %v114
    %295 = vmatprep.subr.mxu0 %v119
    %296 = vmatpush1.msra.mxu0 %v118
    %297 = vmatprep.subr.mxu0 %v123
    %298 = vmatpush1.msra.mxu0 %v122
    %299 = vmatprep.subr.mxu0 %v127
    %300 = vmatpush1.msra.mxu0 %v126
    %301 = vmatprep.subr.mxu0 %v131
    %302 = vmatpush1.msra.mxu0 %v130
    %303 = vmatprep.subr.mxu0 %v135
    %304 = vmatpush1.msra.mxu0 %v134
    %305 = vmatprep.subr.mxu0 %v139
    %306 = vmatpush1.msra.mxu0 %v138
    %307 = vmatprep.subr.mxu0 %v143
    %308 = vmatpush1.msra.mxu0 %v142
    %309 = vmatprep.subr.mxu0 %v147
    %310 = vmatpush1.msra.mxu0 %v146
    %311 = vmatprep.subr.mxu0 %v151
    %312 = vmatpush1.msra.mxu0 %v150
    %313 = vmatprep.subr.mxu0 %v155
    %314 = vmatpush1.msra.mxu0 %v154
    %315 = vmatprep.subr.mxu0 %v159
    %316 = vmatpush1.msra.mxu0 %v158
    %317 = vmatprep.subr.mxu0 %v163
    %318 = vmatpush1.msra.mxu0 %v162
    %319 = vmatprep.subr.mxu0 %v167
    %320 = vmatpush1.msra.mxu0 %v166
    %321 = vmatprep.subr.mxu0 %v171
    %322 = vmatpush1.msra.mxu0 %v170
    %323 = vmatprep.subr.mxu0 %v175
    %324 = vmatpush1.msra.mxu0 %v174
    %325 = vmatprep.subr.mxu0 %v179
    %326 = vmatpush1.msra.mxu0 %v178
    %327 = vmatprep.subr.mxu0 %v183
    %328 = vmatpush1.msra.mxu0 %v182
    %329 = vmatprep.subr.mxu0 %v187
    %330 = vmatpush1.msra.mxu0 %v186
    %331 = vmatprep.subr.mxu0 %v191
    %332 = vmatpush1.msra.mxu0 %v190
    %333 = vmatprep.mubr.f32.mxu0 %v61
    %334 = vmatmul.mubr.f32.gmra.mrb[0].mxu0 %v60
    %v335 = vpop.f32.mrb[0].mxu0
    %v336 = vadd.f32 0.0, %v335
    %v337 = vpop.f32.mrb[0].mxu0
    %v338 = vadd.f32 0.0, %v337
    %339 = vmatprep.mubr.f32.mxu0 %v63
    %340 = vmatmul.mubr.f32.gmra.mrb[0].mxu0 %v62
    %v341 = vpop.f32.mrb[0].mxu0
    %v342 = vadd.f32 0.0, %v341
    %v343 = vpop.f32.mrb[0].mxu0
    %v344 = vadd.f32 0.0, %v343
    %345 = vdwg.mxu0
    %v346 = vadd.f32 %v52, %v259
    %v347 = vadd.f32 %v53, %v261
    %v348 = vadd.f32 %v54, %v336
    %v349 = vadd.f32 %v55, %v338
    %v350 = vadd.f32 %v56, %v265
    %v351 = vadd.f32 %v57, %v267
    %v352 = vadd.f32 %v58, %v342
    %v353 = vadd.f32 %v59, %v344
    %354 = vst [vmem:[#allocation2] sm:$0xff] %v346
    %355 = vst [vmem:[#allocation2 + $0x8] sm:$0xff] %v347
    %356 = vst [vmem:[#allocation2 + $0x10] sm:$0xff] %v348
    %357 = vst [vmem:[#allocation2 + $0x18] sm:$0xff] %v349
    %358 = vst [vmem:[#allocation2 + $0x20] sm:$0xff] %v350
    %359 = vst [vmem:[#allocation2 + $0x28] sm:$0xff] %v351
    %360 = vst [vmem:[#allocation2 + $0x30] sm:$0xff] %v352
    %361 = vst [vmem:[#allocation2 + $0x38] sm:$0xff] %v353
    // Predicated region
    $region22: #{tpu_custom_call.1} parent=1 // pred_check
      %p362 = pneg %p40
    $region23: #{tpu_custom_call.1} parent=1 // pred_check_branch
      %364 = sbr.rel (%p362) target = $region25
    $region24: #{tpu_custom_call.1} parent=1 // pred_region
      %v365 = vld [vmem:[#allocation2] sm:$0xff]
      %v366 = vld [vmem:[#allocation2 + $0x8] sm:$0xff]
      %v367 = vld [vmem:[#allocation2 + $0x10] sm:$0xff]
      %v368 = vld [vmem:[#allocation2 + $0x18] sm:$0xff]
      %v369 = vld [vmem:[#allocation2 + $0x20] sm:$0xff]
      %v370 = vld [vmem:[#allocation2 + $0x28] sm:$0xff]
      %v371 = vld [vmem:[#allocation2 + $0x30] sm:$0xff]
      %v372 = vld [vmem:[#allocation2 + $0x38] sm:$0xff]
      %373 = vst [vmem:[#allocation8] sm:$0xff] %v365
      %374 = vst [vmem:[#allocation8 + $0x8] sm:$0xff] %v366
      %375 = vst [vmem:[#allocation8 + $0x10] sm:$0xff] %v367
      %376 = vst [vmem:[#allocation8 + $0x18] sm:$0xff] %v368
      %377 = vst [vmem:[#allocation8 + $0x20] sm:$0xff] %v369
      %378 = vst [vmem:[#allocation8 + $0x28] sm:$0xff] %v370
      %379 = vst [vmem:[#allocation8 + $0x30] sm:$0xff] %v371
      %380 = vst [vmem:[#allocation8 + $0x38] sm:$0xff] %v372
    $region25: #{tpu_custom_call.1} parent=1 // pred_fallthru
      _
    // Predicated region
    $region26: #{tpu_custom_call.1} parent=1 // pred_check
      _
    $region27: #{tpu_custom_call.1} parent=1 // pred_check_branch
      %382 = sbr.rel (0) target = $region29
    $region28: #{tpu_custom_call.1} parent=1 // pred_region
      %s384 = ssub.s32 1024, 1024
      %385 = vsyncadd [#allocation5], %s384
      %s386 = sshll.u32 [#allocation8], 4
      %s387 = int_to_ptr.vmem [resolvable:$true] %s386
      %392 = dma.vmem_to_hbm [thread:$0]  %s387, 1024, %s2, [#allocation5], 512, 512, 32
    $region29: #{tpu_custom_call.1} parent=1 // pred_fallthru
      _
    // Predicated region
    $region30: #{tpu_custom_call.1} parent=1 // pred_check
      _
    $region31: #{tpu_custom_call.1} parent=1 // pred_check_branch
      %394 = sbr.rel (0) target = $region33
    $region32: #{tpu_custom_call.1} parent=1 // pred_region
      %395 = dma.done [#allocation5], 1024
    $region33: #{tpu_custom_call.1} parent=1 // pred_fallthru
      _
    %396 = vsyncpa [#allocation4], 1
    %397 = vsyncpa [#allocation7], 1
    %398 = vsyncpa [#allocation5], 1

</llo_original>
